<compile_context>
chip_gen: v5e
topology: v5e:2x2
jax: 0.10.0
libtpu: 0.0.40
codegen_flags: <defaults>
</compile_context>

<pallas_src>
import jax
import jax.numpy as jnp
import numpy as np
from jax.experimental import pallas as pl
from jax.experimental.pallas import tpu as pltpu

SUBLANE = 8


def _round_up(x, m):
    return ((x + m - 1) // m) * m


def _pick_tm(batch):
    """M-tile: up to 512 rows, multiple of 8, >=4 tiles for large batches."""
    if batch <= SUBLANE:
        return batch  # single (possibly <8-row) tile; block dim == full dim
    target = _round_up(-(-batch // 4), SUBLANE)      # ~batch/4, rounded to 8
    return max(SUBLANE, min(512, target))


# ---------------------------------------------------------------------------
# Pallas kernel: fused  h = tanh(x @ w1 + b1) ;  o = h @ w2 + b2
# ---------------------------------------------------------------------------
def _softmax_model_kernel(x_ref, w1_ref, b1_ref, w2_ref, b2_ref, h_ref, o_ref):
    # fc1: bf16 operands into the MXU, f32 accumulation, tanh on the EUP.
    h = jnp.tanh(
        jnp.dot(x_ref[...], w1_ref[...], preferred_element_type=jnp.float32)
        + b1_ref[...]
    )
    h_ref[...] = h.astype(h_ref.dtype)
    # fc2 straight from the VMEM-resident hidden (no HBM re-read).
    o_ref[...] = (
        jnp.dot(h.astype(jnp.bfloat16), w2_ref[...],
                preferred_element_type=jnp.float32)
        + b2_ref[...]
    ).astype(o_ref.dtype)


def prepare_params(params):
    """One-time cast/reshape of parameters (kept out of the per-call path)."""
    return {
        "w1": params["w1"].astype(jnp.bfloat16),
        "b1": params["b1"].reshape(1, -1).astype(jnp.float32),
        "w2": params["w2"].astype(jnp.bfloat16),
        "b2": params["b2"].reshape(1, -1).astype(jnp.float32),
    }


def softmax_model_forward(prepared, x):
    """Returns (logits, hidden) exactly like SoftmaxModel.forward -> (x, x2)."""
    B, n_in = x.shape
    w1, b1, w2, b2 = prepared["w1"], prepared["b1"], prepared["w2"], prepared["b2"]
    H = w1.shape[1]
    n_out = w2.shape[1]

    xb = x.astype(jnp.bfloat16)          # halve the dominant input stream
    tm = _pick_tm(B)
    grid = (pl.cdiv(B, tm),)

    hidden, logits = pl.pallas_call(
        _softmax_model_kernel,
        out_shape=(
            jax.ShapeDtypeStruct((B, H), jnp.float32),      # hidden (x2)
            jax.ShapeDtypeStruct((B, n_out), jnp.float32),  # logits
        ),
        grid=grid,
        in_specs=[
            pl.BlockSpec((tm, n_in), lambda i: (i, 0)),   # x   (tiled over M)
            pl.BlockSpec((n_in, H), lambda i: (0, 0)),    # w1  (resident)
            pl.BlockSpec((1, H), lambda i: (0, 0)),       # b1
            pl.BlockSpec((H, n_out), lambda i: (0, 0)),   # w2  (resident)
            pl.BlockSpec((1, n_out), lambda i: (0, 0)),   # b2
        ],
        out_specs=(
            pl.BlockSpec((tm, H), lambda i: (i, 0)),      # hidden
            pl.BlockSpec((tm, n_out), lambda i: (i, 0)),  # logits
        ),
        compiler_params=pltpu.CompilerParams(
            dimension_semantics=("parallel",)),
    )(xb, w1, b1, w2, b2)

    return logits, hidden


# ---------------------------------------------------------------------------
# Deterministic parameter init (mirrors nn.Linear's fan_in-uniform init)
# ---------------------------------------------------------------------------
def init_softmax_model_params(key, n_in, n_out, hidden=64):
    k1, k2, k3, k4 = jax.random.split(key, 4)
    lim1 = 1.0 / np.sqrt(n_in)
    lim2 = 1.0 / np.sqrt(hidden)
    return {
        "w1": jax.random.uniform(k1, (n_in, hidden), jnp.float32, -lim1, lim1),
        "b1": jax.random.uniform(k2, (hidden,), jnp.float32, -lim1, lim1),
        "w2": jax.random.uniform(k3, (hidden, n_out), jnp.float32, -lim2, lim2),
        "b2": jax.random.uniform(k4, (n_out,), jnp.float32, -lim2, lim2),
    }


# Pure-JAX reference (no Pallas, all-f32) for the correctness check.
# TODO(synk): despite the class name, the PyTorch module applies no softmax —
# it returns raw logits and the tanh hidden, which is what we reproduce here.
def reference_forward(params, x):
    h = jnp.tanh(x @ params["w1"] + params["b1"])
    out = h @ params["w2"] + params["b2"]
    return out, h


# ---------------------------------------------------------------------------
if __name__ == "__main__":
    n_in, n_out, batch, hidden_dim = 32, 10, 8, 64
    key = jax.random.PRNGKey(0)
    k_params, k_x = jax.random.split(key)
    params = init_softmax_model_params(k_params, n_in, n_out, hidden_dim)
    x = jax.random.normal(k_x, (batch, n_in), jnp.float32)

    prepared = prepare_params(params)               # one-time bf16 weight cast
    fwd = jax.jit(softmax_model_forward)

    logits, hidden = fwd(prepared, x)
    logits = jax.block_until_ready(logits)
    hidden = jax.block_until_ready(hidden)
    assert logits.shape == (batch, n_out)
    assert hidden.shape == (batch, hidden_dim)

    ref_logits, ref_hidden = reference_forward(params, x)
    ref_logits = jax.block_until_ready(ref_logits)
    ref_hidden = jax.block_until_ready(ref_hidden)
    # bf16-streamed inputs with f32 accumulation -> ~0.4% relative error.
    np.testing.assert_allclose(np.asarray(hidden), np.asarray(ref_hidden),
                               rtol=2e-2, atol=2e-2)
    np.testing.assert_allclose(np.asarray(logits), np.asarray(ref_logits),
                               rtol=2e-2, atol=2e-2)

    print("KERNEL_OK")
</pallas_src>

<mosaic_0001>
module attributes {stable_mosaic.version = 11 : i64} {
  func.func @_softmax_model_kernel(%arg0: i32, %arg1: memref<8x32xbf16, #tpu.memory_space<vmem>>, %arg2: memref<32x64xbf16, #tpu.memory_space<vmem>>, %arg3: memref<1x64xf32, #tpu.memory_space<vmem>>, %arg4: memref<64x10xbf16, #tpu.memory_space<vmem>>, %arg5: memref<1x10xf32, #tpu.memory_space<vmem>>, %arg6: memref<8x64xf32, #tpu.memory_space<vmem>>, %arg7: memref<8x10xf32, #tpu.memory_space<vmem>>) attributes {dimension_semantics = [#tpu.dimension_semantics<parallel>], iteration_bounds = array<i64: 1>, scalar_prefetch = 0 : i64, scratch_operands = 0 : i64, tpu.core_type = #tpu.core_type<tc>, window_params = [{transform_indices = @transform_0, window_bounds = array<i64: 8, 32>}, {pipeline_mode = #tpu.pipeline_mode<synchronous>, transform_indices = @transform_1, window_bounds = array<i64: 32, 64>}, {pipeline_mode = #tpu.pipeline_mode<synchronous>, transform_indices = @transform_2, window_bounds = array<i64: 1, 64>}, {pipeline_mode = #tpu.pipeline_mode<synchronous>, transform_indices = @transform_3, window_bounds = array<i64: 64, 10>}, {pipeline_mode = #tpu.pipeline_mode<synchronous>, transform_indices = @transform_4, window_bounds = array<i64: 1, 10>}, {transform_indices = @transform_5, window_bounds = array<i64: 8, 64>}, {transform_indices = @transform_6, window_bounds = array<i64: 8, 10>}]} {
    %c0 = arith.constant 0 : index
    %c0_0 = arith.constant 0 : index
    %0 = vector.load %arg1[%c0, %c0_0] : memref<8x32xbf16, #tpu.memory_space<vmem>>, vector<8x32xbf16>
    %c0_1 = arith.constant 0 : index
    %c0_2 = arith.constant 0 : index
    %1 = vector.load %arg2[%c0_1, %c0_2] : memref<32x64xbf16, #tpu.memory_space<vmem>>, vector<32x64xbf16>
    %cst = arith.constant dense<0.000000e+00> : vector<8x64xf32>
    %2 = tpu.matmul %0, %1, %cst {dimension_numbers = #tpu.dot_dimension_numbers<[1], [0], [0], [1], [0, 0, 1, 1], [], []>} : vector<8x32xbf16>, vector<32x64xbf16>, vector<8x64xf32> -> vector<8x64xf32>
    %c0_3 = arith.constant 0 : index
    %c0_4 = arith.constant 0 : index
    %3 = vector.load %arg3[%c0_3, %c0_4] : memref<1x64xf32, #tpu.memory_space<vmem>>, vector<1x64xf32>
    %4 = vector.broadcast %3 : vector<1x64xf32> to vector<8x64xf32>
    %5 = arith.addf %2, %4 : vector<8x64xf32>
    %6 = math.tanh %5 : vector<8x64xf32>
    %c0_5 = arith.constant 0 : index
    %c0_6 = arith.constant 0 : index
    %7 = vector.load %arg6[%c0_5, %c0_6] : memref<8x64xf32, #tpu.memory_space<vmem>>, vector<8x64xf32>
    tpu.vector_store %arg6[%c0_5, %c0_6], %6 {strides = array<i32>} : memref<8x64xf32, #tpu.memory_space<vmem>>, vector<8x64xf32>,
    %8 = arith.truncf %6 : vector<8x64xf32> to vector<8x64xbf16>
    %c0_7 = arith.constant 0 : index
    %c0_8 = arith.constant 0 : index
    %9 = vector.load %arg4[%c0_7, %c0_8] : memref<64x10xbf16, #tpu.memory_space<vmem>>, vector<64x10xbf16>
    %cst_9 = arith.constant dense<0.000000e+00> : vector<8x10xf32>
    %10 = tpu.matmul %8, %9, %cst_9 {dimension_numbers = #tpu.dot_dimension_numbers<[1], [0], [0], [1], [0, 0, 1, 1], [], []>} : vector<8x64xbf16>, vector<64x10xbf16>, vector<8x10xf32> -> vector<8x10xf32>
    %c0_10 = arith.constant 0 : index
    %c0_11 = arith.constant 0 : index
    %11 = vector.load %arg5[%c0_10, %c0_11] : memref<1x10xf32, #tpu.memory_space<vmem>>, vector<1x10xf32>
    %12 = vector.broadcast %11 : vector<1x10xf32> to vector<8x10xf32>
    %13 = arith.addf %10, %12 : vector<8x10xf32>
    %c0_12 = arith.constant 0 : index
    %c0_13 = arith.constant 0 : index
    %14 = vector.load %arg7[%c0_12, %c0_13] : memref<8x10xf32, #tpu.memory_space<vmem>>, vector<8x10xf32>
    tpu.vector_store %arg7[%c0_12, %c0_13], %13 {strides = array<i32>} : memref<8x10xf32, #tpu.memory_space<vmem>>, vector<8x10xf32>,
    return
  }
  func.func @transform_0(%arg0: i32) -> (i32, i32) {
    %c0_i32 = arith.constant 0 : i32
    %c0_i32_0 = arith.constant 0 : i32
    return %arg0, %c0_i32 : i32, i32
  }
  func.func @transform_1(%arg0: i32) -> (i32, i32) {
    %c0_i32 = arith.constant 0 : i32
    %c0_i32_0 = arith.constant 0 : i32
    %c0_i32_1 = arith.constant 0 : i32
    return %c0_i32, %c0_i32_0 : i32, i32
  }
  func.func @transform_2(%arg0: i32) -> (i32, i32) {
    %c0_i32 = arith.constant 0 : i32
    %c0_i32_0 = arith.constant 0 : i32
    %c0_i32_1 = arith.constant 0 : i32
    return %c0_i32, %c0_i32_0 : i32, i32
  }
  func.func @transform_3(%arg0: i32) -> (i32, i32) {
    %c0_i32 = arith.constant 0 : i32
    %c0_i32_0 = arith.constant 0 : i32
    %c0_i32_1 = arith.constant 0 : i32
    return %c0_i32, %c0_i32_0 : i32, i32
  }
  func.func @transform_4(%arg0: i32) -> (i32, i32) {
    %c0_i32 = arith.constant 0 : i32
    %c0_i32_0 = arith.constant 0 : i32
    %c0_i32_1 = arith.constant 0 : i32
    return %c0_i32, %c0_i32_0 : i32, i32
  }
  func.func @transform_5(%arg0: i32) -> (i32, i32) {
    %c0_i32 = arith.constant 0 : i32
    %c0_i32_0 = arith.constant 0 : i32
    return %arg0, %c0_i32 : i32, i32
  }
  func.func @transform_6(%arg0: i32) -> (i32, i32) {
    %c0_i32 = arith.constant 0 : i32
    %c0_i32_0 = arith.constant 0 : i32
    return %arg0, %c0_i32 : i32, i32
  }
}

</mosaic_0001>

<llo_original>
// kernel: softmax_model_forward.1
$region0: #{softmax_model_forward.1}
  #allocation0 [shape = 'u32[]', space=smem, size = 0x4, offset = 0x4, fixed_abs, tag = 'smem constant byte address 0x4 - core index']
  #allocation1 [shape = 'u32[72,128]{1,0:T(1,128)}', space=vmem, size = 0x9000, scoped, tag = 'internal scratch']
  %s0 = inlined_call_operand.vmem [shape: bf16[8,32], index: 0, kind: input, shape index: {}]
  %s1 = inlined_call_operand.vmem [shape: bf16[32,64], index: 1, kind: input, shape index: {}]
  %s2 = inlined_call_operand.vmem [shape: f32[1,64], index: 2, kind: input, shape index: {}]
  %s3 = inlined_call_operand.vmem [shape: bf16[64,10], index: 3, kind: input, shape index: {}]
  %s4 = inlined_call_operand.vmem [shape: f32[1,10], index: 4, kind: input, shape index: {}]
  %s5 = inlined_call_operand.hbm [shape: f32[8,64], index: 5, kind: output, shape index: {0}]
  %s6 = inlined_call_operand.hbm [shape: f32[8,10], index: 6, kind: output, shape index: {1}]
  %7 = xla_tuple %s5, %s6
  %s8 = sld [smem:[#allocation0]]
  $region38: #{softmax_model_forward.1} parent=0
    _
  %s10 = ssub.s32 1, %s8
  %s11 = scalar_select 0, %s10, %s8
  $region1: #{softmax_model_forward.1} parent=0
    #allocation2 [shape = 'u8[4096]{0}', space=vmem, size = 0x1000, scoped, tag = 'output window, operand 0, single buffered']
    #allocation3 [shape = 's32[1]{0}', space=sflag, size = 0x4, scoped, tag = 'scoped memory for softmax_model_forward.1']
    #allocation4 [shape = 'u8[4096]{0}', space=vmem, size = 0x1000, scoped, tag = 'output window, operand 1, single buffered']
    #allocation5 [shape = 's32[1]{0}', space=sflag, size = 0x4, scoped, tag = 'scoped memory for softmax_model_forward.1']
    %12 = vsyncpa [#allocation3], 0
    %13 = vsyncpa [#allocation5], 0
    // Predicated region
    $region2: #{softmax_model_forward.1} parent=1 // pred_check
      _
    $region3: #{softmax_model_forward.1} parent=1 // pred_check_branch
      %15 = sbr.rel (0) target = $region5
    $region4: #{softmax_model_forward.1} parent=1 // pred_region
      _
    $region5: #{softmax_model_forward.1} parent=1 // pred_fallthru
      _
    // Predicated region
    $region6: #{softmax_model_forward.1} parent=1 // pred_check
      _
    $region7: #{softmax_model_forward.1} parent=1 // pred_check_branch
      %17 = sbr.rel (0) target = $region9
    $region8: #{softmax_model_forward.1} parent=1 // pred_region
      _
    $region9: #{softmax_model_forward.1} parent=1 // pred_fallthru
      _
    // Predicated region
    $region10: #{softmax_model_forward.1} parent=1 // pred_check
      _
    $region11: #{softmax_model_forward.1} parent=1 // pred_check_branch
      %19 = sbr.rel (0) target = $region13
    $region12: #{softmax_model_forward.1} parent=1 // pred_region
      _
    $region13: #{softmax_model_forward.1} parent=1 // pred_fallthru
      _
    // Predicated region
    $region14: #{softmax_model_forward.1} parent=1 // pred_check
      _
    $region15: #{softmax_model_forward.1} parent=1 // pred_check_branch
      %21 = sbr.rel (0) target = $region17
    $region16: #{softmax_model_forward.1} parent=1 // pred_region
      _
    $region17: #{softmax_model_forward.1} parent=1 // pred_fallthru
      _
    // Predicated region
    $region18: #{softmax_model_forward.1} parent=1 // pred_check
      _
    $region19: #{softmax_model_forward.1} parent=1 // pred_check_branch
      %23 = sbr.rel (0) target = $region21
    $region20: #{softmax_model_forward.1} parent=1 // pred_region
      _
    $region21: #{softmax_model_forward.1} parent=1 // pred_fallthru
      _
    %v25 = vld [vmem:[%s0] sm:$0xf]
    %v26 = vld [vmem:[%s1] sm:$0xf]
    %v27 = vld [vmem:[%s1 + $0x4] sm:$0xf]
    %v28 = vld [vmem:[%s1 + $0x8] sm:$0xf]
    %v29 = vld [vmem:[%s1 + $0xc] sm:$0xf]
    %v30 = vld [vmem:[%s2] sm:$0x1]
    %v32 = vperm.slane %v30, 0
    %v38 = vunpack.c.l.b16 %v26
    %v39 = vunpack.c.l.b16 %v27
    %v40 = vunpack.c.l.b16 %v28
    %v41 = vunpack.c.l.b16 %v29
    %v42 = vpack.c.b16 %v39, %v38
    %v43 = vpack.c.b16 %v41, %v40
    %vm46 = vcmask 261120
    %v48 = vsel %vm46, %v25, 0
    %50 = vmatpush.bf16.msra.mxu0 0
    %51 = vmatpush.bf16.msra.mxu0 0
    %52 = vmatpush.bf16.msra.mxu0 0
    %53 = vmatpush.bf16.msra.mxu0 0
    %54 = vmatpush.bf16.msra.mxu0 0
    %55 = vmatpush.bf16.msra.mxu0 0
    %56 = vmatpush.bf16.msra.mxu0 %v43
    %57 = vmatpush.bf16.msra.mxu0 %v42
    %58 = vmatmul.bf16.gmra.mxu0 %v48
    %v59 = vpop.f32.mrf.mxu0
    %v60 = vadd.f32 %v32, %v59
    %v61 = vpop.f32.mrf.mxu0
    %62 = vdwg.mxu0
    %v63 = vtanh.pop %v60
    %vm64 = vcmask 523264
    %65 = vst.msk [vmem:[#allocation2] sm:$0xff] %vm64, %v63
    %v66 = vpack.c.bf16 %v63, %v63
    %v67 = vld [vmem:[%s3] sm:$0xf]
    %v68 = vld [vmem:[%s3 + $0x4] sm:$0xf]
    %v69 = vld [vmem:[%s3 + $0x8] sm:$0xf]
    %v70 = vld [vmem:[%s3 + $0xc] sm:$0xf]
    %v71 = vld [vmem:[%s3 + $0x10] sm:$0xf]
    %v72 = vld [vmem:[%s3 + $0x14] sm:$0xf]
    %v73 = vld [vmem:[%s3 + $0x18] sm:$0xf]
    %v74 = vld [vmem:[%s3 + $0x1c] sm:$0xf]
    %v75 = vld [vmem:[%s4] sm:$0x1]
    %v77 = vperm.slane %v75, 0
    %v87 = vunpack.c.l.b16 %v67
    %v88 = vunpack.c.l.b16 %v68
    %v89 = vunpack.c.l.b16 %v69
    %v90 = vunpack.c.l.b16 %v70
    %v91 = vunpack.c.l.b16 %v71
    %v92 = vunpack.c.l.b16 %v72
    %v93 = vunpack.c.l.b16 %v73
    %v94 = vunpack.c.l.b16 %v74
    %v95 = vpack.c.b16 %v88, %v87
    %v96 = vpack.c.b16 %v90, %v89
    %v97 = vpack.c.b16 %v92, %v91
    %v98 = vpack.c.b16 %v94, %v93
    %v104 = vsel %vm64, %v66, 0
    %106 = vmatpush.bf16.msra.mxu0 0
    %107 = vmatpush.bf16.msra.mxu0 0
    %108 = vmatpush.bf16.msra.mxu0 0
    %109 = vmatpush.bf16.msra.mxu0 0
    %110 = vmatpush.bf16.msra.mxu0 %v98
    %111 = vmatpush.bf16.msra.mxu0 %v97
    %112 = vmatpush.bf16.msra.mxu0 %v96
    %113 = vmatpush.bf16.msra.mxu0 %v95
    %114 = vmatmul.bf16.gmra.mxu0 %v104
    %v115 = vpop.f32.mrf.mxu0
    %v116 = vadd.f32 %v77, %v115
    %v117 = vpop.f32.mrf.mxu0
    %118 = vdwg.mxu0
    %vm119 = vcmask 80896
    %120 = vst.msk [vmem:[#allocation4] sm:$0xff] %vm119, %v116
    // Predicated region
    $region22: #{softmax_model_forward.1} parent=1 // pred_check
      _
    $region23: #{softmax_model_forward.1} parent=1 // pred_check_branch
      %122 = sbr.rel (0) target = $region25
    $region24: #{softmax_model_forward.1} parent=1 // pred_region
      %124 = vsyncadd [#allocation3], 0
      %s126 = sshll.u32 [#allocation2], 4
      %s127 = int_to_ptr.vmem [resolvable:$true] %s126
      %s128 = sshll.u32 %s5, 4
      %s129 = int_to_ptr.hbm [resolvable:$true] %s128
      %131 = dma.vmem_to_hbm [thread:$0]  %s127, 128, %s129, [#allocation3]
    $region25: #{softmax_model_forward.1} parent=1 // pred_fallthru
      _
    // Predicated region
    $region26: #{softmax_model_forward.1} parent=1 // pred_check
      _
    $region27: #{softmax_model_forward.1} parent=1 // pred_check_branch
      %133 = sbr.rel (0) target = $region29
    $region28: #{softmax_model_forward.1} parent=1 // pred_region
      %135 = vsyncadd [#allocation5], 0
      %s137 = sshll.u32 [#allocation4], 4
      %s138 = int_to_ptr.vmem [resolvable:$true] %s137
      %s139 = sshll.u32 %s6, 4
      %s140 = int_to_ptr.hbm [resolvable:$true] %s139
      %142 = dma.vmem_to_hbm [thread:$0]  %s138, 128, %s140, [#allocation5]
    $region29: #{softmax_model_forward.1} parent=1 // pred_fallthru
      _
    // Predicated region
    $region30: #{softmax_model_forward.1} parent=1 // pred_check
      _
    $region31: #{softmax_model_forward.1} parent=1 // pred_check_branch
      %144 = sbr.rel (0) target = $region33
    $region32: #{softmax_model_forward.1} parent=1 // pred_region
      %146 = dma.done [#allocation3], 128
    $region33: #{softmax_model_forward.1} parent=1 // pred_fallthru
      _
    // Predicated region
    $region34: #{softmax_model_forward.1} parent=1 // pred_check
      _
    $region35: #{softmax_model_forward.1} parent=1 // pred_check_branch
      %148 = sbr.rel (0) target = $region37
    $region36: #{softmax_model_forward.1} parent=1 // pred_region
      %150 = dma.done [#allocation5], 128
    $region37: #{softmax_model_forward.1} parent=1 // pred_fallthru
      _
    %151 = vsyncpa [#allocation3], 1
    %152 = vsyncpa [#allocation5], 1

</llo_original>
